<compile_context>
chip_gen: v7x
topology: tpu7x:2x2x1
jax: 0.10.0
libtpu: 0.0.40
codegen_flags: <defaults>
</compile_context>

<pallas_src>
import functools

import jax
import jax.numpy as jnp
from jax.experimental import pallas as pl
from jax.experimental.pallas import tpu as pltpu


def _proj_matmul_kernel(xcol_ref, w_ref, o_ref, *, block_b):
    # xcol_ref: (block_b, 9*Cin, H*W)  im2col slab (built by the wrapper)
    # w_ref:    (Cout, 9*Cin)          flattened conv weight (VMEM-resident)
    # o_ref:    (block_b, Cout, H*W)   lane-dense output (H*W on lanes)
    w = w_ref[...]
    for b in range(block_b):  # block_b is small & static; one MXU matmul each
        o_ref[b] = jnp.dot(
            w, xcol_ref[b], preferred_element_type=jnp.float32
        ).astype(o_ref.dtype)


def _pick_block_b(n):
    """Largest divisor of n that still leaves >=2 grid steps (v7x megacore)."""
    if n < 2:
        return 1
    for b in range(n // 2, 0, -1):
        if n % b == 0:
            return b
    return 1


def conv3x3_matmul(x_col, w_mat):
    """x_col: (N, 9*Cin, H*W) im2col slab; w_mat: (Cout, 9*Cin).
    Returns (N, Cout, H*W) == NCHW conv output flattened over spatial dims."""
    N, K9, HW = x_col.shape
    Cout = w_mat.shape[0]
    block_b = _pick_block_b(N)
    grid = (N // block_b,)

    kernel = functools.partial(_proj_matmul_kernel, block_b=block_b)
    flops = 2 * N * Cout * K9 * HW
    bytes_accessed = 4 * (N * K9 * HW + Cout * K9 + N * Cout * HW)

    return pl.pallas_call(
        kernel,
        out_shape=jax.ShapeDtypeStruct((N, Cout, HW), x_col.dtype),
        grid_spec=pltpu.PrefetchScalarGridSpec(
            num_scalar_prefetch=0,
            grid=grid,
            in_specs=[
                pl.BlockSpec((block_b, K9, HW), lambda n: (n, 0, 0)),
                pl.BlockSpec((Cout, K9), lambda n: (0, 0)),  # constant -> resident
            ],
            out_specs=pl.BlockSpec((block_b, Cout, HW), lambda n: (n, 0, 0)),
        ),
        compiler_params=pltpu.CompilerParams(
            dimension_semantics=("parallel",)),
        cost_estimate=pl.CostEstimate(
            flops=flops, transcendentals=0, bytes_accessed=bytes_accessed),
    )(x_col, w_mat)


def _im2col_3x3(x_nchw):
    """(N, Cin, H, W) -> (N, 9*Cin, H*W) with row order (dy*3+dx)*Cin + c."""
    N, Cin, H, W = x_nchw.shape
    x_pad = jnp.pad(x_nchw, ((0, 0), (0, 0), (1, 1), (1, 1)))
    taps = [x_pad[:, :, dy:dy + H, dx:dx + W]          # (N, Cin, H, W) each
            for dy in range(3) for dx in range(3)]
    x_col = jnp.stack(taps, axis=1)                    # (N, 9, Cin, H, W)
    return x_col.reshape(N, 9 * Cin, H * W)


@jax.jit
def overlap_patch_embed(x_nchw, weight_oihw):
    """OverlapPatchEmbed.forward: Conv2d(in_c, embed_dim, 3, 1, 1, bias=False).
    Input/output in NCHW, matching PyTorch."""
    N, Cin, H, W = x_nchw.shape
    Cout = weight_oihw.shape[0]

    # im2col slab built by XLA (fuses pad + slices + stack); kernel stays a
    # pure matmul with zero in-kernel relayout.
    x_col = _im2col_3x3(x_nchw)                        # (N, 9*Cin, H*W)

    # (Cout, Cin, 3, 3) -> (Cout, 3, 3, Cin) -> (Cout, 9*Cin); column order
    # (dy*3 + dx)*Cin + c matches the im2col row order above.
    w_mat = jnp.transpose(weight_oihw, (0, 2, 3, 1)).reshape(Cout, 9 * Cin)

    y = conv3x3_matmul(x_col, w_mat)                   # (N, Cout, H*W)
    return y.reshape(N, Cout, H, W)                    # free, contiguous reshape


if __name__ == "__main__":
    in_c, embed_dim = 3, 48
    N, H, W = 2, 16, 16

    key = jax.random.PRNGKey(0)
    kx, kw = jax.random.split(key)
    x = jax.random.normal(kx, (N, in_c, H, W), dtype=jnp.float32)
    # Conv2d weight shape: (out_channels=embed_dim, in_channels=in_c, 3, 3)
    weight = jax.random.normal(kw, (embed_dim, in_c, 3, 3), dtype=jnp.float32) * 0.1

    out = overlap_patch_embed(x, weight)
    out = jax.block_until_ready(out)
    assert out.shape == (N, embed_dim, H, W), out.shape

    # Silent correctness check against the XLA reference convolution.
    ref = jax.lax.conv_general_dilated(
        x, weight, window_strides=(1, 1), padding=((1, 1), (1, 1)),
        dimension_numbers=("NCHW", "OIHW", "NCHW"))
    assert jnp.allclose(out, ref, atol=1e-4, rtol=1e-4)

    print("KERNEL_OK")
</pallas_src>

<mosaic_0001>
module attributes {stable_mosaic.version = 11 : i64} {
  func.func @_proj_matmul_kernel(%arg0: i32, %arg1: memref<1x27x256xf32, #tpu.memory_space<vmem>>, %arg2: memref<48x27xf32, #tpu.memory_space<vmem>>, %arg3: memref<1x48x256xf32, #tpu.memory_space<vmem>>) attributes {dimension_semantics = [#tpu.dimension_semantics<parallel>], iteration_bounds = array<i64: 2>, scalar_prefetch = 0 : i64, scratch_operands = 0 : i64, tpu.core_type = #tpu.core_type<tc>, window_params = [{transform_indices = @transform_0, window_bounds = array<i64: 1, 27, 256>}, {pipeline_mode = #tpu.pipeline_mode<synchronous>, transform_indices = @transform_1, window_bounds = array<i64: 48, 27>}, {transform_indices = @transform_2, window_bounds = array<i64: 1, 48, 256>}]} {
    %c0 = arith.constant 0 : index
    %c0_0 = arith.constant 0 : index
    %0 = vector.load %arg2[%c0, %c0_0] : memref<48x27xf32, #tpu.memory_space<vmem>>, vector<48x27xf32>
    %c0_1 = arith.constant 0 : index
    %c0_2 = arith.constant 0 : index
    %c0_3 = arith.constant 0 : index
    %1 = vector.load %arg1[%c0_1, %c0_2, %c0_3] : memref<1x27x256xf32, #tpu.memory_space<vmem>>, vector<1x27x256xf32>
    %2 = vector.shape_cast %1 : vector<1x27x256xf32> to vector<27x256xf32>
    %cst = arith.constant dense<0.000000e+00> : vector<48x256xf32>
    %3 = tpu.matmul %0, %2, %cst {dimension_numbers = #tpu.dot_dimension_numbers<[1], [0], [0], [1], [0, 0, 1, 1], [], []>} : vector<48x27xf32>, vector<27x256xf32>, vector<48x256xf32> -> vector<48x256xf32>
    %c0_4 = arith.constant 0 : index
    %c0_5 = arith.constant 0 : index
    %c0_6 = arith.constant 0 : index
    %4 = vector.load %arg3[%c0_4, %c0_5, %c0_6] : memref<1x48x256xf32, #tpu.memory_space<vmem>>, vector<1x48x256xf32>
    %5 = vector.shape_cast %4 : vector<1x48x256xf32> to vector<48x256xf32>
    %6 = vector.shape_cast %3 : vector<48x256xf32> to vector<1x48x256xf32>
    tpu.vector_store %arg3[%c0_4, %c0_5, %c0_6], %6 {strides = array<i32>} : memref<1x48x256xf32, #tpu.memory_space<vmem>>, vector<1x48x256xf32>,
    return
  }
  func.func @transform_0(%arg0: i32) -> (i32, i32, i32) {
    %c0_i32 = arith.constant 0 : i32
    %c0_i32_0 = arith.constant 0 : i32
    %c0_i32_1 = arith.constant 0 : i32
    return %arg0, %c0_i32, %c0_i32_0 : i32, i32, i32
  }
  func.func @transform_1(%arg0: i32) -> (i32, i32) {
    %c0_i32 = arith.constant 0 : i32
    %c0_i32_0 = arith.constant 0 : i32
    %c0_i32_1 = arith.constant 0 : i32
    return %c0_i32, %c0_i32_0 : i32, i32
  }
  func.func @transform_2(%arg0: i32) -> (i32, i32, i32) {
    %c0_i32 = arith.constant 0 : i32
    %c0_i32_0 = arith.constant 0 : i32
    %c0_i32_1 = arith.constant 0 : i32
    return %arg0, %c0_i32, %c0_i32_0 : i32, i32, i32
  }
}

</mosaic_0001>

<llo_original>
// kernel: overlap_patch_embed.1
$region0: #{overlap_patch_embed.1}
  #allocation0 [shape = 'u32[]', space=smem, size = 0x4, offset = 0x4, fixed_abs, tag = 'smem constant byte address 0x4 - core index']
  #allocation1 [shape = 'u32[144,128]{1,0:T(1,128)}', space=vmem, size = 0x12000, scoped, tag = 'internal scratch']
  %s0 = inlined_call_operand.vmem [shape: f32[2,27,256], index: 0, kind: input, shape index: {}]
  %s1 = inlined_call_operand.vmem [shape: f32[48,27], index: 1, kind: input, shape index: {}]
  %s2 = inlined_call_operand.vmem [shape: f32[2,48,256], index: 2, kind: output, shape index: {}]
  %s3 = sld [smem:[#allocation0]]
  $region41: #{overlap_patch_embed.1} parent=0
    _
  %s5 = ssub.s32 1, %s3
  %s6 = scalar_select 0, %s5, %s3
  loop: start=0, step=1, limit=4
  $region2: #{overlap_patch_embed.1} parent=0 // loop_pre_header
    _
  $region3: #{overlap_patch_embed.1} parent=0 // loop_header
    %s8 = sphi 0, %s12
    %p9 = scmp.ge.s32.totalorder %s8, 4
    %s18 = sphi 0, %s20
    %s21 = sphi 0, %s18
    %s22 = sphi 0, %s21
    %s38 = sphi 0, %s22
    %s42 = sphi 0, %s42
    %s44 = sphi 0, %s42
    %s45 = sphi 0, %s44
    %s59 = sphi 0, %s45
    %s65 = sphi 0, %s67
    %s68 = sphi 0, %s65
    %s69 = sphi 0, %s68
    %s85 = sphi 0, %s69
  $region4: #{overlap_patch_embed.1} parent=0 // loop_header_branch
    %11 = sbr.rel (%p9) target = $region8
  $region5: #{overlap_patch_embed.1} parent=0 // loop_body
    %s13 = ssub.s32 %s8, 1
    %s14 = ssub.s32 %s8, 2
    %s15 = sadd.s32 %s8, 1
    %s16 = ssub.s32 %s8, %s15
    %p17 = scmp.eq.s32.totalorder %s16, 0
    %s19 = sadd.s32 %s18, 1
    %s20 = scalar_select %p17, %s18, %s19
    %p23 = pneg %p17
    %p24 = scmp.eq.s32.totalorder %s8, 1
    %p25 = por %p23, %p24
    %p26 = scmp.ne.s32.totalorder %s18, %s21
    %p27 = scmp.eq.s32.totalorder %s8, 0
    %p28 = por %p26, %p27
    %p29 = scmp.ne.s32.totalorder %s18, %s21
    %p30 = scmp.eq.s32.totalorder %s13, 1
    %p31 = por %p29, %p30
    %p32 = scmp.ne.s32.totalorder %s21, %s22
    %p33 = scmp.eq.s32.totalorder %s13, 0
    %p34 = por %p32, %p33
    %p35 = scmp.ne.s32.totalorder %s21, %s22
    %p36 = scmp.eq.s32.totalorder %s14, 1
    %p37 = por %p35, %p36
    %p39 = scmp.ne.s32.totalorder %s22, %s38
    %p40 = scmp.eq.s32.totalorder %s14, 0
    %p41 = por %p39, %p40
    %s43 = sadd.s32 %s42, 1
    %p46 = scmp.eq.s32.totalorder %s8, 1
    %p47 = scmp.ne.s32.totalorder %s42, %s44
    %p48 = scmp.eq.s32.totalorder %s8, 0
    %p49 = por %p47, %p48
    %p50 = scmp.ne.s32.totalorder %s42, %s44
    %p51 = scmp.eq.s32.totalorder %s13, 1
    %p52 = por %p50, %p51
    %p53 = scmp.ne.s32.totalorder %s44, %s45
    %p54 = scmp.eq.s32.totalorder %s13, 0
    %p55 = por %p53, %p54
    %p56 = scmp.ne.s32.totalorder %s44, %s45
    %p57 = scmp.eq.s32.totalorder %s14, 1
    %p58 = por %p56, %p57
    %p60 = scmp.ne.s32.totalorder %s45, %s59
    %p61 = scmp.eq.s32.totalorder %s14, 0
    %p62 = por %p60, %p61
    %s63 = ssub.s32 %s8, %s15
    %p64 = scmp.eq.s32.totalorder %s63, 0
    %s66 = sadd.s32 %s65, 1
    %s67 = scalar_select %p64, %s65, %s66
    %p70 = pneg %p64
    %p71 = scmp.eq.s32.totalorder %s8, 1
    %p72 = por %p70, %p71
    %p73 = scmp.ne.s32.totalorder %s65, %s68
    %p74 = scmp.eq.s32.totalorder %s8, 0
    %p75 = por %p73, %p74
    %p76 = scmp.ne.s32.totalorder %s65, %s68
    %p77 = scmp.eq.s32.totalorder %s13, 1
    %p78 = por %p76, %p77
    %p79 = scmp.ne.s32.totalorder %s68, %s69
    %p80 = scmp.eq.s32.totalorder %s13, 0
    %p81 = por %p79, %p80
    %p82 = scmp.ne.s32.totalorder %s68, %s69
    %p83 = scmp.eq.s32.totalorder %s14, 1
    %p84 = por %p82, %p83
    %p86 = scmp.ne.s32.totalorder %s69, %s85
    %p87 = scmp.eq.s32.totalorder %s14, 0
    %p88 = por %p86, %p87
    %p89 = scmp.le.s32.totalorder 1, %s8
    %p90 = scmp.lt.s32.totalorder %s8, 3
    %p91 = pnand %p89, %p90
    %p92 = pneg %p91
    // Predicated region
    $region9: #{overlap_patch_embed.1} parent=5 // pred_check
      _
    $region10: #{overlap_patch_embed.1} parent=5 // pred_check_branch
      %94 = sbr.rel (%p91) target = $region12
    $region11: #{overlap_patch_embed.1} parent=5 // pred_region
      %s95 = ssub.s32 %s8, 1
      // Predicated region
      $region13: #{overlap_patch_embed.1} parent=11 // pred_check
        %p96 = pneg %p55
      $region14: #{overlap_patch_embed.1} parent=11 // pred_check_branch
        %98 = sbr.rel (%p96) target = $region16
      $region15: #{overlap_patch_embed.1} parent=11 // pred_region
        _
      $region16: #{overlap_patch_embed.1} parent=11 // pred_fallthru
        _
    $region12: #{overlap_patch_embed.1} parent=5 // pred_fallthru
      _
    %p99 = scmp.lt.s32.totalorder %s8, 2
    // Predicated region
    $region17: #{overlap_patch_embed.1} parent=5 // pred_check
      %p100 = pneg %p99
    $region18: #{overlap_patch_embed.1} parent=5 // pred_check_branch
      %102 = sbr.rel (%p100) target = $region20
    $region19: #{overlap_patch_embed.1} parent=5 // pred_region
      // Predicated region
      $region21: #{overlap_patch_embed.1} parent=19 // pred_check
        %p103 = pneg %p28
      $region22: #{overlap_patch_embed.1} parent=19 // pred_check_branch
        %105 = sbr.rel (%p103) target = $region24
      $region23: #{overlap_patch_embed.1} parent=19 // pred_region
        %p106 = scmp.lt.s32.totalorder %s8, 1
        %s107 = scalar_select %p106, %s8, 1
        %s108 = smul.addr %s107, 8
        %s109 = smul.addr %s108, 8
        %s110 = scalar_lea.vmem %s0, %s109
      $region24: #{overlap_patch_embed.1} parent=19 // pred_fallthru
        _
    $region20: #{overlap_patch_embed.1} parent=5 // pred_fallthru
      _
    %p111 = scmp.le.s32.totalorder 1, %s8
    %p112 = scmp.lt.s32.totalorder %s8, 3
    %p113 = pnand %p111, %p112
    %p114 = pneg %p113
    // Predicated region
    $region25: #{overlap_patch_embed.1} parent=5 // pred_check
      _
    $region26: #{overlap_patch_embed.1} parent=5 // pred_check_branch
      %116 = sbr.rel (%p113) target = $region28
    $region27: #{overlap_patch_embed.1} parent=5 // pred_region
      %s117 = ssub.s32 %s8, 1
      %p118 = scmp.lt.s32.totalorder %s13, 1
      %s119 = scalar_select %p118, %s13, 1
      %s120 = smul.addr %s119, 8
      %s121 = smul.addr %s120, 8
      %s122 = scalar_lea.vmem %s0, %s121
      %p123 = pneg %p34
      %p124 = pneg %p31
      %p125 = pneg %p55
      %p126 = pneg %p52
      %p127 = pneg %p81
      %p128 = pneg %p78
      %p129 = scmp.lt.s32.totalorder %s13, 1
      %s130 = scalar_select %p129, %s13, 1
      %s131 = smul.addr %s130, 12
      %s132 = smul.addr %s131, 8
      %s133 = scalar_lea.vmem %s2, %s132
      %p134 = scmp.lt.s32.totalorder %s13, 1
      %s135 = scalar_select %p134, %s13, 1
      %s136 = smul.addr %s135, 8
      %s137 = smul.addr %s136, 8
      %s138 = scalar_lea.vmem %s0, %s137
      %p139 = scmp.lt.s32.totalorder %s13, 1
      %s140 = scalar_select %p139, %s13, 1
      %s141 = smul.addr %s140, 12
      %s142 = smul.addr %s141, 8
      %s143 = scalar_lea.vmem %s2, %s142
      %v144 = vld [vmem:[%s1] sm:$0xff]
      %v145 = vld [vmem:[%s1 + $0x8] sm:$0xff]
      %v146 = vld [vmem:[%s1 + $0x10] sm:$0xff]
      %v147 = vld [vmem:[%s1 + $0x18] sm:$0xff]
      %v148 = vld [vmem:[%s1 + $0x20] sm:$0xff]
      %v149 = vld [vmem:[%s1 + $0x28] sm:$0xff]
      %v150 = vld [vmem:[%s138] sm:$0xff]
      %v151 = vld [vmem:[%s138 + $0x8] sm:$0xff]
      %v152 = vld [vmem:[%s138 + $0x10] sm:$0xff]
      %v153 = vld [vmem:[%s138 + $0x18] sm:$0xff]
      %v154 = vld [vmem:[%s138 + $0x20] sm:$0xff]
      %v155 = vld [vmem:[%s138 + $0x28] sm:$0xff]
      %v156 = vld [vmem:[%s138 + $0x30] sm:$0x7]
      %v157 = vld [vmem:[%s138 + $0x38] sm:$0x7]
      %vm158 = vcmask 220160
      %v160 = vsel %vm158, %v144, 0
      %v163 = vsel %vm158, %v145, 0
      %v166 = vsel %vm158, %v146, 0
      %v169 = vsel %vm158, %v147, 0
      %v172 = vsel %vm158, %v148, 0
      %v175 = vsel %vm158, %v149, 0
      %vm177 = vcmask 1042432
      %v179 = vsel %vm177, %v156, 0
      %v182 = vsel %vm177, %v157, 0
      %184 = vmatprep.subr.mxu0 %v151
      %185 = vmatpush1.msra.mxu0 %v150
      %186 = vmatprep.subr.mxu0 %v153
      %187 = vmatpush1.msra.mxu0 %v152
      %188 = vmatprep.subr.mxu0 %v155
      %189 = vmatpush1.msra.mxu0 %v154
      %190 = vmatprep.subr.mxu0 %v182
      %191 = vmatpush1.msra.mxu0 %v179
      %192 = vmatprep.subr.mxu0 0.0
      %193 = vmatpush1.msra.mxu0 0.0
      %194 = vmatprep.subr.mxu0 0.0
      %195 = vmatpush1.msra.mxu0 0.0
      %196 = vmatprep.subr.mxu0 0.0
      %197 = vmatpush1.msra.mxu0 0.0
      %198 = vmatprep.subr.mxu0 0.0
      %199 = vmatpush1.msra.mxu0 0.0
      %200 = vmatprep.subr.mxu0 0.0
      %201 = vmatpush1.msra.mxu0 0.0
      %202 = vmatprep.subr.mxu0 0.0
      %203 = vmatpush1.msra.mxu0 0.0
      %204 = vmatprep.subr.mxu0 0.0
      %205 = vmatpush1.msra.mxu0 0.0
      %206 = vmatprep.subr.mxu0 0.0
      %207 = vmatpush1.msra.mxu0 0.0
      %208 = vmatprep.subr.mxu0 0.0
      %209 = vmatpush1.msra.mxu0 0.0
      %210 = vmatprep.subr.mxu0 0.0
      %211 = vmatpush1.msra.mxu0 0.0
      %212 = vmatprep.subr.mxu0 0.0
      %213 = vmatpush1.msra.mxu0 0.0
      %214 = vmatprep.subr.mxu0 0.0
      %215 = vmatpush1.msra.mxu0 0.0
      %216 = vmatprep.subr.mxu0 0.0
      %217 = vmatpush1.msra.mxu0 0.0
      %218 = vmatprep.subr.mxu0 0.0
      %219 = vmatpush1.msra.mxu0 0.0
      %220 = vmatprep.subr.mxu0 0.0
      %221 = vmatpush1.msra.mxu0 0.0
      %222 = vmatprep.subr.mxu0 0.0
      %223 = vmatpush1.msra.mxu0 0.0
      %224 = vmatprep.subr.mxu0 0.0
      %225 = vmatpush1.msra.mxu0 0.0
      %226 = vmatprep.subr.mxu0 0.0
      %227 = vmatpush1.msra.mxu0 0.0
      %228 = vmatprep.subr.mxu0 0.0
      %229 = vmatpush1.msra.mxu0 0.0
      %230 = vmatprep.subr.mxu0 0.0
      %231 = vmatpush1.msra.mxu0 0.0
      %232 = vmatprep.subr.mxu0 0.0
      %233 = vmatpush1.msra.mxu0 0.0
      %234 = vmatprep.subr.mxu0 0.0
      %235 = vmatpush1.msra.mxu0 0.0
      %236 = vmatprep.subr.mxu0 0.0
      %237 = vmatpush1.msra.mxu0 0.0
      %238 = vmatprep.subr.mxu0 0.0
      %239 = vmatpush1.msra.mxu0 0.0
      %240 = vmatprep.subr.mxu0 0.0
      %241 = vmatpush1.msra.mxu0 0.0
      %242 = vmatprep.subr.mxu0 0.0
      %243 = vmatpush1.msra.mxu0 0.0
      %244 = vmatprep.subr.mxu0 0.0
      %245 = vmatpush1.msra.mxu0 0.0
      %246 = vmatprep.subr.mxu0 0.0
      %247 = vmatpush1.msra.mxu0 0.0
      %248 = vmatprep.mubr.f32.mxu0 0.0
      %249 = vmatmul.mubr.f32.gmra.mrb[0].mxu0 %v160
      %v250 = vpop.f32.mrb[0].mxu0
      %v251 = vadd.f32 0.0, %v250
      %v252 = vpop.f32.mrb[0].mxu0
      %v253 = vadd.f32 0.0, %v252
      %254 = vmatprep.mubr.f32.mxu0 0.0
      %255 = vmatmul.mubr.f32.gmra.mrb[0].mxu0 %v163
      %v256 = vpop.f32.mrb[0].mxu0
      %v257 = vadd.f32 0.0, %v256
      %v258 = vpop.f32.mrb[0].mxu0
      %v259 = vadd.f32 0.0, %v258
      %260 = vmatprep.mubr.f32.mxu0 0.0
      %261 = vmatmul.mubr.f32.gmra.mrb[0].mxu0 %v166
      %v262 = vpop.f32.mrb[0].mxu0
      %v263 = vadd.f32 0.0, %v262
      %v264 = vpop.f32.mrb[0].mxu0
      %v265 = vadd.f32 0.0, %v264
      %266 = vmatprep.mubr.f32.mxu0 0.0
      %267 = vmatmul.mubr.f32.gmra.mrb[0].mxu0 %v169
      %v268 = vpop.f32.mrb[0].mxu0
      %v269 = vadd.f32 0.0, %v268
      %v270 = vpop.f32.mrb[0].mxu0
      %v271 = vadd.f32 0.0, %v270
      %272 = vmatprep.mubr.f32.mxu0 0.0
      %273 = vmatmul.mubr.f32.gmra.mrb[0].mxu0 %v172
      %v274 = vpop.f32.mrb[0].mxu0
      %v275 = vadd.f32 0.0, %v274
      %v276 = vpop.f32.mrb[0].mxu0
      %v277 = vadd.f32 0.0, %v276
      %278 = vmatprep.mubr.f32.mxu0 0.0
      %279 = vmatmul.mubr.f32.gmra.mrb[0].mxu0 %v175
      %v280 = vpop.f32.mrb[0].mxu0
      %v281 = vadd.f32 0.0, %v280
      %v282 = vpop.f32.mrb[0].mxu0
      %v283 = vadd.f32 0.0, %v282
      %284 = vdwg.mxu0
      %285 = vst [vmem:[%s143] sm:$0xff] %v251
      %286 = vst [vmem:[%s143 + $0x8] sm:$0xff] %v253
      %287 = vst [vmem:[%s143 + $0x10] sm:$0xff] %v257
      %288 = vst [vmem:[%s143 + $0x18] sm:$0xff] %v259
      %289 = vst [vmem:[%s143 + $0x20] sm:$0xff] %v263
      %290 = vst [vmem:[%s143 + $0x28] sm:$0xff] %v265
      %291 = vst [vmem:[%s143 + $0x30] sm:$0xff] %v269
      %292 = vst [vmem:[%s143 + $0x38] sm:$0xff] %v271
      %293 = vst [vmem:[%s143 + $0x40] sm:$0xff] %v275
      %294 = vst [vmem:[%s143 + $0x48] sm:$0xff] %v277
      %295 = vst [vmem:[%s143 + $0x50] sm:$0xff] %v281
      %296 = vst [vmem:[%s143 + $0x58] sm:$0xff] %v283
      %p297 = scmp.lt.s32.totalorder %s13, 1
      %s298 = scalar_select %p297, %s13, 1
      %s299 = smul.addr %s298, 12
      %s300 = smul.addr %s299, 8
      %s301 = scalar_lea.vmem %s2, %s300
      // Predicated region
      $region29: #{overlap_patch_embed.1} parent=27 // pred_check
        %p302 = pneg %p78
      $region30: #{overlap_patch_embed.1} parent=27 // pred_check_branch
        %304 = sbr.rel (%p302) target = $region32
      $region31: #{overlap_patch_embed.1} parent=27 // pred_region
        _
      $region32: #{overlap_patch_embed.1} parent=27 // pred_fallthru
        _
    $region28: #{overlap_patch_embed.1} parent=5 // pred_fallthru
      _
    %p305 = scmp.le.s32.totalorder 2, %s8
    // Predicated region
    $region33: #{overlap_patch_embed.1} parent=5 // pred_check
      %p306 = pneg %p305
    $region34: #{overlap_patch_embed.1} parent=5 // pred_check_branch
      %308 = sbr.rel (%p306) target = $region36
    $region35: #{overlap_patch_embed.1} parent=5 // pred_region
      %s309 = ssub.s32 %s8, 2
      // Predicated region
      $region37: #{overlap_patch_embed.1} parent=35 // pred_check
        %p310 = pneg %p84
      $region38: #{overlap_patch_embed.1} parent=35 // pred_check_branch
        %312 = sbr.rel (%p310) target = $region40
      $region39: #{overlap_patch_embed.1} parent=35 // pred_region
        %p313 = scmp.lt.s32.totalorder %s14, 1
        %s314 = scalar_select %p313, %s14, 1
        %s315 = smul.addr %s314, 12
        %s316 = smul.addr %s315, 8
        %s317 = scalar_lea.vmem %s2, %s316
      $region40: #{overlap_patch_embed.1} parent=35 // pred_fallthru
        _
    $region36: #{overlap_patch_embed.1} parent=5 // pred_fallthru
      _
  $region6: #{overlap_patch_embed.1} parent=0 // loop_footer
    %s12 = sadd.s32 1, %s8
  $region7: #{overlap_patch_embed.1} parent=0 // loop_footer_branch
    %7 = sbr.rel target = $region3
  $region8: #{overlap_patch_embed.1} parent=0 // loop_exit
    _

</llo_original>
